<compile_context>
chip_gen: v7x
topology: tpu7x:2x2x1
jax: 0.10.0
libtpu: 0.0.40
codegen_flags: <defaults>
</compile_context>

<pallas_src>
import jax
import jax.numpy as jnp
from jax.experimental import pallas as pl
from jax.experimental.pallas import tpu as pltpu


def _round_up(n, m):
    return ((n + m - 1) // m) * m


def _cdiv(a, b):
    return -(-a // b)


# ----------------------------------------------------------------------------- kernel


def _gaussian_sample_kernel(x_ref, w_ref, b_ref, eps_ref, out_ref):
    """One batch tile: fused dual-linear -> softplus -> reparameterize -> packed store."""
    n = out_ref.shape[-1]            # out_features (unpadded)
    out_pad = w_ref.shape[-1] // 2   # 128-aligned split point of the fused matmul

    # Single fused MXU pass for both linear layers (bf16 inputs, f32 accumulate).
    fused = jnp.dot(x_ref[...], w_ref[...], preferred_element_type=jnp.float32)
    fused = fused + b_ref[...]

    mu = fused[:, :n]
    lv_lin = fused[:, out_pad:out_pad + n]

    # Numerically stable softplus (matches F.softplus): max(t,0) + log1p(exp(-|t|)).
    log_var = jnp.maximum(lv_lin, 0.0) + jnp.log1p(jnp.exp(-jnp.abs(lv_lin)))

    # Reparameterization trick; epsilon supplied from outside (== torch.randn).
    z = mu + jnp.exp(0.5 * log_var) * eps_ref[...]

    # Packed, unpadded output: [3, tm, out_features] = (z | mu | log_var).
    out_ref[0] = z
    out_ref[1] = mu
    out_ref[2] = log_var


# ----------------------------------------------------------------------------- wrapper


def pack_gaussian_params(w_mu, b_mu, w_lv, b_lv):
    """Fuse the two nn.Linear layers into one lane-padded weight/bias.

    Call ONCE at parameter-init time (not per forward).  w_* are the nn.Linear
    weights pre-transposed to [in_features, out_features].
    Returns (w_fused_bf16 [in, 2*out_pad], b_fused_f32 [1, 2*out_pad]).
    """
    in_features, out_features = w_mu.shape
    out_pad = _round_up(out_features, 128)

    w_fused = jnp.zeros((in_features, 2 * out_pad), jnp.float32)
    w_fused = w_fused.at[:, :out_features].set(w_mu.astype(jnp.float32))
    w_fused = w_fused.at[:, out_pad:out_pad + out_features].set(w_lv.astype(jnp.float32))

    b_fused = jnp.zeros((1, 2 * out_pad), jnp.float32)
    b_fused = b_fused.at[0, :out_features].set(jnp.reshape(b_mu, (-1,)).astype(jnp.float32))
    b_fused = b_fused.at[0, out_pad:out_pad + out_features].set(
        jnp.reshape(b_lv, (-1,)).astype(jnp.float32))

    return w_fused.astype(jnp.bfloat16), b_fused


def _pick_batch_tile(B, in_features, out_features, out_pad2, block_rows):
    """Batch tile rows: VMEM-capped, padding-minimizing, >=2 tiles when possible (v7x)."""
    # Conservative per-row VMEM footprint: double-buffered x / eps / packed output
    # tiles plus live f32 intermediates of the fused matmul and the elementwise chain.
    per_row = (2 * 2 * in_features            # x bf16, 2 pipeline buffers
               + 2 * 4 * out_features         # eps f32, 2 buffers
               + 2 * 3 * 4 * out_features     # packed (z|mu|lv) f32, 2 buffers
               + 4 * out_pad2                 # fused matmul result f32
               + 4 * 4 * out_features)        # mu / log_var / z / temps f32
    vmem_budget = 24 * 1024 * 1024            # comfortably inside v7x 64 MiB physical
    cap = max(8, (vmem_budget // max(per_row, 1)) // 8 * 8)
    rows = max(8, min(block_rows, cap))

    n_tiles = max(1, _cdiv(B, rows))
    if n_tiles == 1 and B >= 16:
        n_tiles = 2                           # shard the batch across both v7x TensorCores
    # Only the last tile carries padding (at most 7 rows beyond ceil(B / n_tiles)).
    return _round_up(_cdiv(B, n_tiles), 8)


def gaussian_sample(x, w_packed, b_packed, eps, *, block_rows=1024):
    """GaussianSample forward.

    x:        [B, in_features] float32
    w_packed: [in_features, 2*out_pad] bf16  (from pack_gaussian_params, built once)
    b_packed: [1, 2*out_pad] float32
    eps:      [B, out_features] float32, epsilon ~ N(0,1) (== torch.randn in the module)
    Returns (z, mu, log_var), each [B, out_features] float32.
    """
    B, in_features = x.shape
    out_features = eps.shape[-1]
    out_pad2 = w_packed.shape[1]

    tm = _pick_batch_tile(B, in_features, out_features, out_pad2, block_rows)
    b_pad = _round_up(B, tm)

    x_bf16 = x.astype(jnp.bfloat16)
    eps_f32 = eps.astype(jnp.float32)
    if b_pad != B:
        pad = b_pad - B
        x_bf16 = jnp.pad(x_bf16, ((0, pad), (0, 0)))
        eps_f32 = jnp.pad(eps_f32, ((0, pad), (0, 0)))
    grid = (b_pad // tm,)

    # NOTE: the fused weight / bias are small and VMEM-resident (constant index_map);
    # their double-buffer cost is negligible at these sizes, so no pipeline_mode tweak.
    packed_out = pl.pallas_call(
        _gaussian_sample_kernel,
        out_shape=jax.ShapeDtypeStruct((3, b_pad, out_features), jnp.float32),
        grid_spec=pltpu.PrefetchScalarGridSpec(
            num_scalar_prefetch=0,
            grid=grid,
            in_specs=[
                pl.BlockSpec((tm, in_features), lambda i: (i, 0)),
                pl.BlockSpec((in_features, out_pad2), lambda i: (0, 0)),  # resident
                pl.BlockSpec((1, out_pad2), lambda i: (0, 0)),            # resident
                pl.BlockSpec((tm, out_features), lambda i: (i, 0)),
            ],
            out_specs=pl.BlockSpec((3, tm, out_features), lambda i: (0, i, 0)),
        ),
        compiler_params=pltpu.CompilerParams(
            dimension_semantics=("parallel",),
            vmem_limit_bytes=32 * 1024 * 1024,
        ),
    )(x_bf16, w_packed, b_packed, eps_f32)

    z = packed_out[0, :B]
    mu = packed_out[1, :B]
    log_var = packed_out[2, :B]
    return z, mu, log_var


# ----------------------------------------------------------------------------- demo / check


if __name__ == "__main__":
    key = jax.random.PRNGKey(0)
    k_x, k_wmu, k_bmu, k_wlv, k_blv, k_eps = jax.random.split(key, 6)

    batch = 8
    in_features = 32
    out_features = 16

    # Deterministic init mimicking nn.Linear's uniform(-1/sqrt(in), 1/sqrt(in)).
    bound = 1.0 / float(in_features) ** 0.5
    x = jax.random.normal(k_x, (batch, in_features), dtype=jnp.float32)
    w_mu = jax.random.uniform(k_wmu, (in_features, out_features), jnp.float32, -bound, bound)
    b_mu = jax.random.uniform(k_bmu, (out_features,), jnp.float32, -bound, bound)
    w_lv = jax.random.uniform(k_wlv, (in_features, out_features), jnp.float32, -bound, bound)
    b_lv = jax.random.uniform(k_blv, (out_features,), jnp.float32, -bound, bound)

    # epsilon ~ N(0,1), drawn outside the kernel exactly like torch.randn in the module.
    eps = jax.random.normal(k_eps, (batch, out_features), dtype=jnp.float32)

    # Weight fusion happens ONCE (init-time), not in the per-call hot path.
    w_packed, b_packed = pack_gaussian_params(w_mu, b_mu, w_lv, b_lv)

    z, mu, log_var = gaussian_sample(x, w_packed, b_packed, eps)
    jax.block_until_ready((z, mu, log_var))

    # Reference with the same bf16 matmul-input precision as the kernel.
    xb = x.astype(jnp.bfloat16)
    mu_ref = jnp.dot(xb, w_mu.astype(jnp.bfloat16), preferred_element_type=jnp.float32) + b_mu
    lv_ref = jax.nn.softplus(
        jnp.dot(xb, w_lv.astype(jnp.bfloat16), preferred_element_type=jnp.float32) + b_lv)
    z_ref = mu_ref + jnp.exp(0.5 * lv_ref) * eps

    assert z.shape == (batch, out_features)
    assert mu.shape == (batch, out_features)
    assert log_var.shape == (batch, out_features)
    assert bool(jnp.all(jnp.isfinite(z)))
    assert jnp.allclose(mu, mu_ref, atol=2e-2, rtol=2e-2)
    assert jnp.allclose(log_var, lv_ref, atol=2e-2, rtol=2e-2)
    assert jnp.allclose(z, z_ref, atol=2e-2, rtol=2e-2)

    print("KERNEL_OK")
</pallas_src>

<mosaic_0001>
module attributes {stable_mosaic.version = 11 : i64} {
  func.func @_gaussian_sample_kernel(%arg0: i32, %arg1: memref<8x32xbf16, #tpu.memory_space<vmem>>, %arg2: memref<32x256xbf16, #tpu.memory_space<vmem>>, %arg3: memref<1x256xf32, #tpu.memory_space<vmem>>, %arg4: memref<8x16xf32, #tpu.memory_space<vmem>>, %arg5: memref<3x8x16xf32, #tpu.memory_space<vmem>>) attributes {dimension_semantics = [#tpu.dimension_semantics<parallel>], iteration_bounds = array<i64: 1>, scalar_prefetch = 0 : i64, scratch_operands = 0 : i64, tpu.core_type = #tpu.core_type<tc>, window_params = [{transform_indices = @transform_0, window_bounds = array<i64: 8, 32>}, {pipeline_mode = #tpu.pipeline_mode<synchronous>, transform_indices = @transform_1, window_bounds = array<i64: 32, 256>}, {pipeline_mode = #tpu.pipeline_mode<synchronous>, transform_indices = @transform_2, window_bounds = array<i64: 1, 256>}, {transform_indices = @transform_3, window_bounds = array<i64: 8, 16>}, {transform_indices = @transform_4, window_bounds = array<i64: 3, 8, 16>}]} {
    %c0 = arith.constant 0 : index
    %c0_0 = arith.constant 0 : index
    %0 = vector.load %arg1[%c0, %c0_0] : memref<8x32xbf16, #tpu.memory_space<vmem>>, vector<8x32xbf16>
    %c0_1 = arith.constant 0 : index
    %c0_2 = arith.constant 0 : index
    %1 = vector.load %arg2[%c0_1, %c0_2] : memref<32x256xbf16, #tpu.memory_space<vmem>>, vector<32x256xbf16>
    %cst = arith.constant dense<0.000000e+00> : vector<8x256xf32>
    %2 = tpu.matmul %0, %1, %cst {dimension_numbers = #tpu.dot_dimension_numbers<[1], [0], [0], [1], [0, 0, 1, 1], [], []>} : vector<8x32xbf16>, vector<32x256xbf16>, vector<8x256xf32> -> vector<8x256xf32>
    %c0_3 = arith.constant 0 : index
    %c0_4 = arith.constant 0 : index
    %3 = vector.load %arg3[%c0_3, %c0_4] : memref<1x256xf32, #tpu.memory_space<vmem>>, vector<1x256xf32>
    %4 = vector.broadcast %3 : vector<1x256xf32> to vector<8x256xf32>
    %5 = arith.addf %2, %4 : vector<8x256xf32>
    %6 = vector.extract_strided_slice %5 {offsets = [0, 0], sizes = [8, 16], strides = [1, 1]} : vector<8x256xf32> to vector<8x16xf32>
    %7 = vector.extract_strided_slice %5 {offsets = [0, 128], sizes = [8, 16], strides = [1, 1]} : vector<8x256xf32> to vector<8x16xf32>
    %cst_5 = arith.constant 0.000000e+00 : f32
    %8 = vector.broadcast %cst_5 : f32 to vector<8x16xf32>
    %9 = arith.maximumf %7, %8 : vector<8x16xf32>
    %10 = math.absf %7 : vector<8x16xf32>
    %cst_6 = arith.constant 0.000000e+00 : f32
    %11 = vector.broadcast %cst_6 : f32 to vector<8x16xf32>
    %12 = arith.subf %11, %10 : vector<8x16xf32>
    %13 = math.exp %12 : vector<8x16xf32>
    %14 = math.log1p %13 : vector<8x16xf32>
    %15 = arith.addf %9, %14 : vector<8x16xf32>
    %cst_7 = arith.constant 5.000000e-01 : f32
    %16 = vector.broadcast %cst_7 : f32 to vector<8x16xf32>
    %17 = arith.mulf %16, %15 : vector<8x16xf32>
    %18 = math.exp %17 : vector<8x16xf32>
    %c0_8 = arith.constant 0 : index
    %c0_9 = arith.constant 0 : index
    %19 = vector.load %arg4[%c0_8, %c0_9] : memref<8x16xf32, #tpu.memory_space<vmem>>, vector<8x16xf32>
    %20 = arith.mulf %18, %19 : vector<8x16xf32>
    %21 = arith.addf %6, %20 : vector<8x16xf32>
    %c0_10 = arith.constant 0 : index
    %c0_11 = arith.constant 0 : index
    %c0_12 = arith.constant 0 : index
    %22 = vector.load %arg5[%c0_10, %c0_11, %c0_12] : memref<3x8x16xf32, #tpu.memory_space<vmem>>, vector<1x8x16xf32>
    %23 = vector.shape_cast %22 : vector<1x8x16xf32> to vector<8x16xf32>
    %24 = vector.shape_cast %21 : vector<8x16xf32> to vector<1x8x16xf32>
    tpu.vector_store %arg5[%c0_10, %c0_11, %c0_12], %24 {strides = array<i32>} : memref<3x8x16xf32, #tpu.memory_space<vmem>>, vector<1x8x16xf32>,
    %c1 = arith.constant 1 : index
    %c0_13 = arith.constant 0 : index
    %c0_14 = arith.constant 0 : index
    %25 = vector.load %arg5[%c1, %c0_13, %c0_14] : memref<3x8x16xf32, #tpu.memory_space<vmem>>, vector<1x8x16xf32>
    %26 = vector.shape_cast %25 : vector<1x8x16xf32> to vector<8x16xf32>
    %27 = vector.shape_cast %6 : vector<8x16xf32> to vector<1x8x16xf32>
    tpu.vector_store %arg5[%c1, %c0_13, %c0_14], %27 {strides = array<i32>} : memref<3x8x16xf32, #tpu.memory_space<vmem>>, vector<1x8x16xf32>,
    %c2 = arith.constant 2 : index
    %c0_15 = arith.constant 0 : index
    %c0_16 = arith.constant 0 : index
    %28 = vector.load %arg5[%c2, %c0_15, %c0_16] : memref<3x8x16xf32, #tpu.memory_space<vmem>>, vector<1x8x16xf32>
    %29 = vector.shape_cast %28 : vector<1x8x16xf32> to vector<8x16xf32>
    %30 = vector.shape_cast %15 : vector<8x16xf32> to vector<1x8x16xf32>
    tpu.vector_store %arg5[%c2, %c0_15, %c0_16], %30 {strides = array<i32>} : memref<3x8x16xf32, #tpu.memory_space<vmem>>, vector<1x8x16xf32>,
    return
  }
  func.func @transform_0(%arg0: i32) -> (i32, i32) {
    %c0_i32 = arith.constant 0 : i32
    %c0_i32_0 = arith.constant 0 : i32
    return %arg0, %c0_i32 : i32, i32
  }
  func.func @transform_1(%arg0: i32) -> (i32, i32) {
    %c0_i32 = arith.constant 0 : i32
    %c0_i32_0 = arith.constant 0 : i32
    %c0_i32_1 = arith.constant 0 : i32
    return %c0_i32, %c0_i32_0 : i32, i32
  }
  func.func @transform_2(%arg0: i32) -> (i32, i32) {
    %c0_i32 = arith.constant 0 : i32
    %c0_i32_0 = arith.constant 0 : i32
    %c0_i32_1 = arith.constant 0 : i32
    return %c0_i32, %c0_i32_0 : i32, i32
  }
  func.func @transform_3(%arg0: i32) -> (i32, i32) {
    %c0_i32 = arith.constant 0 : i32
    %c0_i32_0 = arith.constant 0 : i32
    return %arg0, %c0_i32 : i32, i32
  }
  func.func @transform_4(%arg0: i32) -> (i32, i32, i32) {
    %c0_i32 = arith.constant 0 : i32
    %c0_i32_0 = arith.constant 0 : i32
    %c0_i32_1 = arith.constant 0 : i32
    return %c0_i32, %arg0, %c0_i32_0 : i32, i32, i32
  }
}

</mosaic_0001>

<llo_original>
// kernel: tpu_custom_call.1
$region0: #{tpu_custom_call.1}
  #allocation0 [shape = 'u32[]', space=smem, size = 0x4, offset = 0x4, fixed_abs, tag = 'smem constant byte address 0x4 - core index']
  #allocation1 [shape = 'u32[144,128]{1,0:T(1,128)}', space=vmem, size = 0x12000, scoped, tag = 'internal scratch']
  %s0 = inlined_call_operand.hbm [shape: bf16[8,32], index: 0, kind: input, shape index: {}]
  %s1 = inlined_call_operand.hbm [shape: bf16[32,256], index: 1, kind: input, shape index: {}]
  %s2 = inlined_call_operand.vmem [shape: f32[1,256], index: 2, kind: input, shape index: {}]
  %s3 = inlined_call_operand.vmem [shape: f32[8,16], index: 3, kind: input, shape index: {}]
  %s4 = inlined_call_operand.hbm [shape: f32[3,8,16], index: 4, kind: output, shape index: {}]
  %s5 = sld [smem:[#allocation0]]
  $region34: #{tpu_custom_call.1} parent=0
    _
  %s7 = ssub.s32 1, %s5
  %s8 = scalar_select 0, %s7, %s5
  $region1: #{tpu_custom_call.1} parent=0
    #allocation2 [shape = 'u8[2048]{0}', space=vmem, size = 0x800, scoped, tag = 'input window, operand 0, single buffered']
    #allocation3 [shape = 's32[1]{0}', space=sflag, size = 0x4, scoped, tag = 'scoped memory for tpu_custom_call.1']
    #allocation4 [shape = 's32[1]{0}', space=sflag, size = 0x4, scoped, tag = 'scoped memory for tpu_custom_call.1']
    #allocation5 [shape = 'u8[16384]{0}', space=vmem, size = 0x4000, scoped, tag = 'input window, operand 1, single buffered']
    #allocation6 [shape = 's32[1]{0}', space=sflag, size = 0x4, scoped, tag = 'scoped memory for tpu_custom_call.1']
    #allocation7 [shape = 'u8[12288]{0}', space=vmem, size = 0x3000, scoped, tag = 'output window, operand 0, single buffered']
    %9 = vsyncpa [#allocation3], 0
    %10 = vsyncpa [#allocation6], 0
    %11 = vsyncpa [#allocation4], 0
    // Predicated region
    $region2: #{tpu_custom_call.1} parent=1 // pred_check
      _
    $region3: #{tpu_custom_call.1} parent=1 // pred_check_branch
      %13 = sbr.rel (0) target = $region5
    $region4: #{tpu_custom_call.1} parent=1 // pred_region
      %s15 = ssub.s32 64, 64
      %16 = vsyncadd [#allocation3], %s15
      %s18 = sshll.u32 [#allocation2], 4
      %s19 = int_to_ptr.vmem [resolvable:$true] %s18
      %21 = dma.hbm_to_vmem [thread:$0]  %s0, 64, %s19, [#allocation3]
    $region5: #{tpu_custom_call.1} parent=1 // pred_fallthru
      _
    // Predicated region
    $region6: #{tpu_custom_call.1} parent=1 // pred_check
      _
    $region7: #{tpu_custom_call.1} parent=1 // pred_check_branch
      %23 = sbr.rel (0) target = $region9
    $region8: #{tpu_custom_call.1} parent=1 // pred_region
      %s25 = ssub.s32 512, 512
      %26 = vsyncadd [#allocation6], %s25
      %s27 = sshll.u32 [#allocation5], 4
      %s28 = int_to_ptr.vmem [resolvable:$true] %s27
      %33 = dma.hbm_to_vmem [thread:$0]  %s1, 512, %s28, [#allocation6], 128, 128, 8
    $region9: #{tpu_custom_call.1} parent=1 // pred_fallthru
      _
    // Predicated region
    $region10: #{tpu_custom_call.1} parent=1 // pred_check
      _
    $region11: #{tpu_custom_call.1} parent=1 // pred_check_branch
      %35 = sbr.rel (0) target = $region13
    $region12: #{tpu_custom_call.1} parent=1 // pred_region
      _
    $region13: #{tpu_custom_call.1} parent=1 // pred_fallthru
      _
    // Predicated region
    $region14: #{tpu_custom_call.1} parent=1 // pred_check
      _
    $region15: #{tpu_custom_call.1} parent=1 // pred_check_branch
      %37 = sbr.rel (0) target = $region17
    $region16: #{tpu_custom_call.1} parent=1 // pred_region
      _
    $region17: #{tpu_custom_call.1} parent=1 // pred_fallthru
      _
    // Predicated region
    $region18: #{tpu_custom_call.1} parent=1 // pred_check
      _
    $region19: #{tpu_custom_call.1} parent=1 // pred_check_branch
      %39 = sbr.rel (0) target = $region21
    $region20: #{tpu_custom_call.1} parent=1 // pred_region
      %40 = dma.done [#allocation3], 64
    $region21: #{tpu_custom_call.1} parent=1 // pred_fallthru
      _
    // Predicated region
    $region22: #{tpu_custom_call.1} parent=1 // pred_check
      _
    $region23: #{tpu_custom_call.1} parent=1 // pred_check_branch
      %42 = sbr.rel (0) target = $region25
    $region24: #{tpu_custom_call.1} parent=1 // pred_region
      %43 = dma.done [#allocation6], 512
    $region25: #{tpu_custom_call.1} parent=1 // pred_fallthru
      _
    %v45 = vld [vmem:[#allocation2] sm:$0xf]
    %v46 = vld [vmem:[#allocation5] sm:$0xff]
    %v47 = vld [vmem:[#allocation5 + $0x8] sm:$0xff]
    %v48 = vld [vmem:[#allocation5 + $0x10] sm:$0xff]
    %v49 = vld [vmem:[#allocation5 + $0x18] sm:$0xff]
    %v50 = vld [vmem:[%s2] sm:$0x3]
    %v52 = vlaneseq
    %v53 = vshrl.u32 %v52, 7
    %v54 = vsub.s32 0, %v53
    %v55 = vrot.slane %v50, %v54
    %v56 = vlaneseq
    %v57 = vshrl.u32 %v56, 7
    %v58 = vsub.s32 1, %v57
    %v59 = vrot.slane %v50, %v58
    %v66 = vunpack.c.l.b16 %v46
    %v67 = vunpack.c.h.b16 %v46
    %v68 = vunpack.c.l.b16 %v47
    %v69 = vunpack.c.h.b16 %v47
    %v70 = vunpack.c.l.b16 %v48
    %v71 = vunpack.c.h.b16 %v48
    %v72 = vunpack.c.l.b16 %v49
    %v73 = vunpack.c.h.b16 %v49
    %v74 = vpack.c.b16 %v68, %v66
    %v75 = vpack.c.b16 %v69, %v67
    %v76 = vpack.c.b16 %v72, %v70
    %v77 = vpack.c.b16 %v73, %v71
    %vm82 = vcmask 261120
    %v84 = vsel %vm82, %v45, 0
    %86 = vmatprep.subr.bf16.mxu0 %v75
    %87 = vmatpush1.bf16.msra.mxu0 %v74
    %88 = vmatprep.subr.bf16.mxu0 %v77
    %89 = vmatpush1.bf16.msra.mxu0 %v76
    %90 = vmatprep.subr.bf16.mxu0 0
    %91 = vmatpush1.bf16.msra.mxu0 0
    %92 = vmatprep.subr.bf16.mxu0 0
    %93 = vmatpush1.bf16.msra.mxu0 0
    %94 = vmatprep.subr.bf16.mxu0 0
    %95 = vmatpush1.bf16.msra.mxu0 0
    %96 = vmatprep.subr.bf16.mxu0 0
    %97 = vmatpush1.bf16.msra.mxu0 0
    %98 = vmatprep.subr.bf16.mxu0 0
    %99 = vmatpush1.bf16.msra.mxu0 0
    %100 = vmatprep.subr.bf16.mxu0 0
    %101 = vmatpush1.bf16.msra.mxu0 0
    %102 = vmatprep.subr.bf16.mxu0 0
    %103 = vmatpush1.bf16.msra.mxu0 0
    %104 = vmatprep.subr.bf16.mxu0 0
    %105 = vmatpush1.bf16.msra.mxu0 0
    %106 = vmatprep.subr.bf16.mxu0 0
    %107 = vmatpush1.bf16.msra.mxu0 0
    %108 = vmatprep.subr.bf16.mxu0 0
    %109 = vmatpush1.bf16.msra.mxu0 0
    %110 = vmatprep.subr.bf16.mxu0 0
    %111 = vmatpush1.bf16.msra.mxu0 0
    %112 = vmatprep.subr.bf16.mxu0 0
    %113 = vmatpush1.bf16.msra.mxu0 0
    %114 = vmatprep.subr.bf16.mxu0 0
    %115 = vmatpush1.bf16.msra.mxu0 0
    %116 = vmatprep.subr.bf16.mxu0 0
    %117 = vmatpush1.bf16.msra.mxu0 0
    %118 = vmatprep.mubr.bf16.mxu0 0
    %119 = vmatmul.mubr.bf16.gmra.mrb[0].mxu0 %v84
    %v120 = vpop.f32.mrb[0].mxu0
    %v121 = vadd.f32 %v55, %v120
    %v122 = vpop.f32.mrb[0].mxu0
    %v123 = vadd.f32 %v59, %v122
    %v124 = vpop.f32.mrb[0].mxu0
    %v125 = vpop.f32.mrb[0].mxu0
    %126 = vdwg.mxu0
    %v127 = vmax.f32 %v123, 0.0
    %v128 = vand.u32 2147483647, %v123
    %v129 = vsub.f32 0.0, %v128
    %v130 = vmul.f32 %v129, 1.442695
    %v131 = vpow.pop %v130
    %v132 = vadd.f32 %v131, 1.0
    %v133 = vlog2.pop %v132
    %v134 = vmul.f32 %v133, 0.6931472
    %v135 = vmul.f32 -0.5, %v131
    %v136 = vadd.f32 %v135, 1.0
    %v137 = vmul.f32 %v136, %v131
    %v138 = vand.u32 2147483647, %v131
    %vm139 = vcmp.lt.f32.partialorder %v138, 0.0004427343
    %v140 = vsel %vm139, %v137, %v134
    %v141 = vadd.f32 %v127, %v140
    %v142 = vmul.f32 %v141, 0.5
    %v143 = vmul.f32 %v142, 1.442695
    %v144 = vpow.pop %v143
    %v145 = vld [vmem:[%s3] sm:$0xff]
    %v146 = vmul.f32 %v144, %v145
    %v147 = vadd.f32 %v121, %v146
    %vm148 = vcmask 130048
    %149 = vst.msk [vmem:[#allocation7] sm:$0xff] %vm148, %v147
    %s150 = scalar_lea.vmem [#allocation7], 8
    %151 = vst.msk [vmem:[%s150] sm:$0xff] %vm148, %v121
    %s152 = scalar_lea.vmem [#allocation7], 16
    %153 = vst.msk [vmem:[%s152] sm:$0xff] %vm148, %v141
    // Predicated region
    $region26: #{tpu_custom_call.1} parent=1 // pred_check
      _
    $region27: #{tpu_custom_call.1} parent=1 // pred_check_branch
      %155 = sbr.rel (0) target = $region29
    $region28: #{tpu_custom_call.1} parent=1 // pred_region
      %s157 = ssub.s32 384, 384
      %158 = vsyncadd [#allocation4], %s157
      %s159 = sshll.u32 [#allocation7], 4
      %s160 = int_to_ptr.vmem [resolvable:$true] %s159
      %165 = dma.vmem_to_hbm [thread:$0]  %s160, 384, %s4, [#allocation4], 128, 128, 8
    $region29: #{tpu_custom_call.1} parent=1 // pred_fallthru
      _
    // Predicated region
    $region30: #{tpu_custom_call.1} parent=1 // pred_check
      _
    $region31: #{tpu_custom_call.1} parent=1 // pred_check_branch
      %167 = sbr.rel (0) target = $region33
    $region32: #{tpu_custom_call.1} parent=1 // pred_region
      %168 = dma.done [#allocation4], 384
    $region33: #{tpu_custom_call.1} parent=1 // pred_fallthru
      _
    %169 = vsyncpa [#allocation3], 1
    %170 = vsyncpa [#allocation6], 1
    %171 = vsyncpa [#allocation4], 1

</llo_original>
